<compile_context>
chip_gen: v7x
topology: tpu7x:2x2x1
jax: 0.10.0
libtpu: 0.0.40
codegen_flags: <defaults>
</compile_context>

<pallas_src>
import math
import jax
import jax.numpy as jnp
from jax import lax
from jax.experimental import pallas as pl
from jax.experimental.pallas import tpu as pltpu


def _encoder_input_kernel(x_ref, w_ref, pe_ref, gb_ref, out_ref):
    # x_ref:  (1, s_block, D_in)   one batch row-block
    # w_ref:  (D_in, H)            resident weights
    # pe_ref: (s_block, H)         pos-enc rows with linear bias folded in
    # gb_ref: (2, H)               [gamma; beta]
    # out_ref:(1, s_block, H)
    y = jnp.dot(x_ref[0], w_ref[...], preferred_element_type=jnp.float32)
    y = y + pe_ref[...]                                # proj + bias + pos-enc

    # LayerNorm over last dim (eps = 1e-5, nn.LayerNorm default), two-pass
    # variance to avoid cancellation -> NaN through rsqrt.
    mean = jnp.mean(y, axis=-1, keepdims=True)
    c = y - mean
    var = jnp.mean(c * c, axis=-1, keepdims=True)
    norm = c * lax.rsqrt(var + 1e-5)
    out = norm * gb_ref[0:1, :] + gb_ref[1:2, :]
    out_ref[0] = out.astype(out_ref.dtype)
    # TODO(synk): nn.Dropout(p=0.1) is identity in eval mode; training-mode
    # dropout (stateful PRNG mask) intentionally not implemented.


def make_positional_encoding(max_len, d_model):
    """Same construction as PositionalEncoding.__init__ (buffer `pe`)."""
    position = jnp.arange(0, max_len, dtype=jnp.float32)[:, None]            # (L, 1)
    div_term = jnp.exp(
        jnp.arange(0, d_model, 2, dtype=jnp.float32) * (-math.log(10000.0) / d_model)
    )                                                                         # (H/2,)
    pe = jnp.zeros((max_len, d_model), dtype=jnp.float32)
    pe = pe.at[:, 0::2].set(jnp.sin(position * div_term))
    pe = pe.at[:, 1::2].set(jnp.cos(position * div_term))
    return pe[None]                                                           # (1, L, H)


def transformer_encoder_input(x, w, b, gamma, beta, pe_full, *, s_block=None):
    """x: (B, S, D_in) -> (out (B, S, H), pos_enc (1, S, H))."""
    B, S, D_in = x.shape
    H = w.shape[1]

    pe_slice = pe_full[:, :S, :]                      # (1, S, H); pos_enc output
    pe_plus_b = pe_slice[0] + b                       # (S, H); resident in VMEM
    gb = jnp.stack([gamma, beta])                     # (2, H)

    # Seq tiling: cap the row block (~512) so DMA/compute overlap and both
    # grid axes can be sharded across TensorCores on v7x.  For the tiny
    # shipped shapes this degenerates to s_block == S.
    if s_block is None:
        if S <= 512:
            s_block = S
        else:
            s_block = S
            for cand in range(512, 7, -8):
                if S % cand == 0:
                    s_block = cand
                    break
    assert S % s_block == 0 and (s_block == S or s_block % 8 == 0)

    grid = (S // s_block, B)                          # batch innermost -> PE resident

    out = pl.pallas_call(
        _encoder_input_kernel,
        out_shape=jax.ShapeDtypeStruct((B, S, H), x.dtype),
        grid_spec=pltpu.PrefetchScalarGridSpec(
            num_scalar_prefetch=0,
            grid=grid,
            in_specs=[
                pl.BlockSpec((1, s_block, D_in), lambda s, b: (b, s, 0)),  # x rows
                pl.BlockSpec((D_in, H), lambda s, b: (0, 0)),              # W (resident)
                pl.BlockSpec((s_block, H), lambda s, b: (s, 0)),           # pe + bias
                pl.BlockSpec((2, H), lambda s, b: (0, 0)),                 # [gamma; beta]
            ],
            out_specs=pl.BlockSpec((1, s_block, H), lambda s, b: (b, s, 0)),
        ),
        compiler_params=pltpu.CompilerParams(
            dimension_semantics=("parallel", "parallel"),
        ),
    )(x, w, pe_plus_b, gb)

    return out, pe_slice


def _reference(x, w, b, gamma, beta, pe_full):
    S = x.shape[1]
    proj = jnp.einsum("bsd,dh->bsh", x, w) + b
    y = proj + pe_full[:, :S, :]
    mean = jnp.mean(y, axis=-1, keepdims=True)
    var = jnp.mean((y - mean) ** 2, axis=-1, keepdims=True)
    norm = (y - mean) / jnp.sqrt(var + 1e-5)
    return norm * gamma + beta, pe_full[:, :S, :]


if __name__ == "__main__":
    # Small shapes consistent with the module config: input_dim=16, hidden_dim=32
    B, S, D_in, H = 2, 8, 16, 32
    MAX_LEN = 5000

    key = jax.random.PRNGKey(0)
    k_x, k_w, k_b = jax.random.split(key, 3)

    x = jax.random.normal(k_x, (B, S, D_in), dtype=jnp.float32)

    # Deterministic parameter init (nn.Linear-like scale; LayerNorm = ones/zeros)
    bound = 1.0 / math.sqrt(D_in)
    w = jax.random.uniform(k_w, (D_in, H), minval=-bound, maxval=bound,
                           dtype=jnp.float32)
    b = jax.random.uniform(k_b, (H,), minval=-bound, maxval=bound,
                           dtype=jnp.float32)
    gamma = jnp.ones((H,), dtype=jnp.float32)
    beta = jnp.zeros((H,), dtype=jnp.float32)

    pe_full = make_positional_encoding(MAX_LEN, H)

    out, pos_enc = transformer_encoder_input(x, w, b, gamma, beta, pe_full)
    out = jax.block_until_ready(out)
    pos_enc = jax.block_until_ready(pos_enc)

    ref_out, ref_pe = _reference(x, w, b, gamma, beta, pe_full)
    assert out.shape == (B, S, H)
    assert pos_enc.shape == (1, S, H)
    assert jnp.allclose(out, ref_out, atol=1e-4, rtol=1e-4)
    assert jnp.allclose(pos_enc, ref_pe)

    print("KERNEL_OK")
</pallas_src>

<mosaic_0001>
module attributes {stable_mosaic.version = 11 : i64} {
  func.func @_encoder_input_kernel(%arg0: i32, %arg1: i32, %arg2: memref<1x8x16xf32, #tpu.memory_space<vmem>>, %arg3: memref<16x32xf32, #tpu.memory_space<vmem>>, %arg4: memref<8x32xf32, #tpu.memory_space<vmem>>, %arg5: memref<2x32xf32, #tpu.memory_space<vmem>>, %arg6: memref<1x8x32xf32, #tpu.memory_space<vmem>>) attributes {dimension_semantics = [#tpu.dimension_semantics<parallel>, #tpu.dimension_semantics<parallel>], iteration_bounds = array<i64: 1, 2>, scalar_prefetch = 0 : i64, scratch_operands = 0 : i64, tpu.core_type = #tpu.core_type<tc>, window_params = [{transform_indices = @transform_0, window_bounds = array<i64: 1, 8, 16>}, {pipeline_mode = #tpu.pipeline_mode<synchronous>, transform_indices = @transform_1, window_bounds = array<i64: 16, 32>}, {transform_indices = @transform_2, window_bounds = array<i64: 8, 32>}, {pipeline_mode = #tpu.pipeline_mode<synchronous>, transform_indices = @transform_3, window_bounds = array<i64: 2, 32>}, {transform_indices = @transform_4, window_bounds = array<i64: 1, 8, 32>}]} {
    %c0 = arith.constant 0 : index
    %c0_0 = arith.constant 0 : index
    %c0_1 = arith.constant 0 : index
    %0 = vector.load %arg2[%c0, %c0_0, %c0_1] : memref<1x8x16xf32, #tpu.memory_space<vmem>>, vector<1x8x16xf32>
    %1 = vector.shape_cast %0 : vector<1x8x16xf32> to vector<8x16xf32>
    %c0_2 = arith.constant 0 : index
    %c0_3 = arith.constant 0 : index
    %2 = vector.load %arg3[%c0_2, %c0_3] : memref<16x32xf32, #tpu.memory_space<vmem>>, vector<16x32xf32>
    %cst = arith.constant dense<0.000000e+00> : vector<8x32xf32>
    %3 = tpu.matmul %1, %2, %cst {dimension_numbers = #tpu.dot_dimension_numbers<[1], [0], [0], [1], [0, 0, 1, 1], [], []>} : vector<8x16xf32>, vector<16x32xf32>, vector<8x32xf32> -> vector<8x32xf32>
    %c0_4 = arith.constant 0 : index
    %c0_5 = arith.constant 0 : index
    %4 = vector.load %arg4[%c0_4, %c0_5] : memref<8x32xf32, #tpu.memory_space<vmem>>, vector<8x32xf32>
    %5 = arith.addf %3, %4 : vector<8x32xf32>
    %cst_6 = arith.constant dense<0.000000e+00> : vector<8xf32>
    %6 = vector.multi_reduction <add>, %5, %cst_6 [1] : vector<8x32xf32> to vector<8xf32>
    %7 = vector.shape_cast %6 : vector<8xf32> to vector<8x1xf32>
    %cst_7 = arith.constant 3.200000e+01 : f32
    %8 = vector.broadcast %cst_7 : f32 to vector<8x1xf32>
    %9 = arith.divf %7, %8 : vector<8x1xf32>
    %10 = vector.broadcast %9 : vector<8x1xf32> to vector<8x32xf32>
    %11 = arith.subf %5, %10 : vector<8x32xf32>
    %12 = arith.mulf %11, %11 : vector<8x32xf32>
    %cst_8 = arith.constant dense<0.000000e+00> : vector<8xf32>
    %13 = vector.multi_reduction <add>, %12, %cst_8 [1] : vector<8x32xf32> to vector<8xf32>
    %14 = vector.shape_cast %13 : vector<8xf32> to vector<8x1xf32>
    %cst_9 = arith.constant 3.200000e+01 : f32
    %15 = vector.broadcast %cst_9 : f32 to vector<8x1xf32>
    %16 = arith.divf %14, %15 : vector<8x1xf32>
    %cst_10 = arith.constant 9.99999974E-6 : f32
    %17 = vector.broadcast %cst_10 : f32 to vector<8x1xf32>
    %18 = arith.addf %16, %17 : vector<8x1xf32>
    %19 = math.rsqrt %18 : vector<8x1xf32>
    %20 = vector.broadcast %19 : vector<8x1xf32> to vector<8x32xf32>
    %21 = arith.mulf %11, %20 : vector<8x32xf32>
    %c0_11 = arith.constant 0 : index
    %c0_12 = arith.constant 0 : index
    %22 = vector.load %arg5[%c0_11, %c0_12] : memref<2x32xf32, #tpu.memory_space<vmem>>, vector<1x32xf32>
    %23 = vector.broadcast %22 : vector<1x32xf32> to vector<8x32xf32>
    %24 = arith.mulf %21, %23 : vector<8x32xf32>
    %c1 = arith.constant 1 : index
    %c0_13 = arith.constant 0 : index
    %25 = vector.load %arg5[%c1, %c0_13] : memref<2x32xf32, #tpu.memory_space<vmem>>, vector<1x32xf32>
    %26 = vector.broadcast %25 : vector<1x32xf32> to vector<8x32xf32>
    %27 = arith.addf %24, %26 : vector<8x32xf32>
    %c0_14 = arith.constant 0 : index
    %c0_15 = arith.constant 0 : index
    %c0_16 = arith.constant 0 : index
    %28 = vector.load %arg6[%c0_14, %c0_15, %c0_16] : memref<1x8x32xf32, #tpu.memory_space<vmem>>, vector<1x8x32xf32>
    %29 = vector.shape_cast %28 : vector<1x8x32xf32> to vector<8x32xf32>
    %30 = vector.shape_cast %27 : vector<8x32xf32> to vector<1x8x32xf32>
    tpu.vector_store %arg6[%c0_14, %c0_15, %c0_16], %30 {strides = array<i32>} : memref<1x8x32xf32, #tpu.memory_space<vmem>>, vector<1x8x32xf32>,
    return
  }
  func.func @transform_0(%arg0: i32, %arg1: i32) -> (i32, i32, i32) {
    %c0_i32 = arith.constant 0 : i32
    %c0_i32_0 = arith.constant 0 : i32
    return %arg1, %arg0, %c0_i32 : i32, i32, i32
  }
  func.func @transform_1(%arg0: i32, %arg1: i32) -> (i32, i32) {
    %c0_i32 = arith.constant 0 : i32
    %c0_i32_0 = arith.constant 0 : i32
    %c0_i32_1 = arith.constant 0 : i32
    return %c0_i32, %c0_i32_0 : i32, i32
  }
  func.func @transform_2(%arg0: i32, %arg1: i32) -> (i32, i32) {
    %c0_i32 = arith.constant 0 : i32
    %c0_i32_0 = arith.constant 0 : i32
    return %arg0, %c0_i32 : i32, i32
  }
  func.func @transform_3(%arg0: i32, %arg1: i32) -> (i32, i32) {
    %c0_i32 = arith.constant 0 : i32
    %c0_i32_0 = arith.constant 0 : i32
    %c0_i32_1 = arith.constant 0 : i32
    return %c0_i32, %c0_i32_0 : i32, i32
  }
  func.func @transform_4(%arg0: i32, %arg1: i32) -> (i32, i32, i32) {
    %c0_i32 = arith.constant 0 : i32
    %c0_i32_0 = arith.constant 0 : i32
    return %arg1, %arg0, %c0_i32 : i32, i32, i32
  }
}

</mosaic_0001>

<llo_original>
// kernel: tpu_custom_call.1
$region0: #{tpu_custom_call.1}
  #allocation0 [shape = 'u32[]', space=smem, size = 0x4, offset = 0x4, fixed_abs, tag = 'smem constant byte address 0x4 - core index']
  #allocation1 [shape = 'u32[144,128]{1,0:T(1,128)}', space=vmem, size = 0x12000, scoped, tag = 'internal scratch']
  %s0 = inlined_call_operand.hbm [shape: f32[2,8,16], index: 0, kind: input, shape index: {}]
  %s1 = inlined_call_operand.hbm [shape: f32[16,32], index: 1, kind: input, shape index: {}]
  %s2 = inlined_call_operand.hbm [shape: f32[8,32], index: 2, kind: input, shape index: {}]
  %s3 = inlined_call_operand.vmem [shape: f32[2,32], index: 3, kind: input, shape index: {}]
  %s4 = inlined_call_operand.hbm [shape: f32[2,8,32], index: 4, kind: output, shape index: {}]
  %s5 = sld [smem:[#allocation0]]
  $region61: #{tpu_custom_call.1} parent=0
    _
  %s7 = ssub.s32 1, %s5
  %s8 = scalar_select 0, %s7, %s5
  $region1: #{tpu_custom_call.1} parent=0
    #allocation2 [shape = 'u8[8192]{0}', space=vmem, size = 0x2000, scoped, tag = 'input window, operand 0']
    #allocation3 [shape = 's32[2]{0}', space=sflag, size = 0x8, scoped, tag = 'scoped memory for tpu_custom_call.1']
    #allocation4 [shape = 's32[2]{0}', space=sflag, size = 0x8, scoped, tag = 'scoped memory for tpu_custom_call.1']
    #allocation5 [shape = 'u8[8192]{0}', space=vmem, size = 0x2000, scoped, tag = 'input window, operand 1, single buffered']
    #allocation6 [shape = 's32[1]{0}', space=sflag, size = 0x4, scoped, tag = 'scoped memory for tpu_custom_call.1']
    #allocation7 [shape = 'u8[4096]{0}', space=vmem, size = 0x1000, scoped, tag = 'input window, operand 2, single buffered']
    #allocation8 [shape = 'u8[8192]{0}', space=vmem, size = 0x2000, scoped, tag = 'output window, operand 0']
    %9 = vsyncpa [#allocation3], 0
    %s10 = scalar_lea.sflag [#allocation3], 1
    %11 = vsyncpa %s10, 0
    %12 = vsyncpa [#allocation6], 0
    %13 = vsyncpa [#allocation4], 0
    %s14 = scalar_lea.sflag [#allocation4], 1
    %15 = vsyncpa %s14, 0
    loop: start=0, step=1, limit=4
    $region2: #{tpu_custom_call.1} parent=1 // loop_pre_header
      _
    $region3: #{tpu_custom_call.1} parent=1 // loop_header
      %s17 = sphi 0, %s21
      %p18 = scmp.ge.s32.totalorder %s17, 4
      %s24 = sphi 0, %s36
      %s25 = sphi 0, %s32
      %s26 = sphi 0, %s24
      %s27 = sphi 0, %s25
      %s28 = sphi 0, %s26
      %s29 = sphi 0, %s27
      %s41 = sphi 0, %s43
      %s44 = sphi 0, %s41
      %s45 = sphi 0, %s44
      %s61 = sphi 0, %s45
      %s65 = sphi 0, %s65
      %s67 = sphi 0, %s65
      %s68 = sphi 0, %s67
      %s82 = sphi 0, %s68
      %s88 = sphi 0, %s90
      %s91 = sphi 0, %s88
      %s92 = sphi 0, %s91
      %s108 = sphi 0, %s92
      %s112 = sphi 0, %s112
      %s114 = sphi 0, %s112
      %s115 = sphi 0, %s114
      %s129 = sphi 0, %s115
      %s137 = sphi 0, %s139
      %s140 = sphi 0, %s137
      %s141 = sphi 0, %s140
      %s157 = sphi 0, %s141
    $region4: #{tpu_custom_call.1} parent=1 // loop_header_branch
      %20 = sbr.rel (%p18) target = $region8
    $region5: #{tpu_custom_call.1} parent=1 // loop_body
      %s22 = ssub.s32 %s17, 1
      %s23 = ssub.s32 %s17, 2
      %s30 = sadd.s32 1, %s25
      %p31 = scmp.ge.s32.totalorder %s30, 2
      %s32 = scalar_select %p31, 0, %s30
      %s33 = sadd.s32 1, %s24
      %s34 = scalar_select %p31, %s33, %s24
      %p35 = scmp.ge.s32.totalorder %s34, 1
      %s36 = scalar_select %p35, 0, %s34
      %s37 = ssub.s32 %s25, %s32
      %s38 = ssub.s32 %s24, %s36
      %s39 = sor.u32 %s37, %s38
      %p40 = scmp.eq.s32.totalorder %s39, 0
      %s42 = sadd.s32 %s41, 1
      %s43 = scalar_select %p40, %s41, %s42
      %p46 = pneg %p40
      %p47 = scmp.eq.s32.totalorder %s17, 1
      %p48 = por %p46, %p47
      %p49 = scmp.ne.s32.totalorder %s41, %s44
      %p50 = scmp.eq.s32.totalorder %s17, 0
      %p51 = por %p49, %p50
      %p52 = scmp.ne.s32.totalorder %s41, %s44
      %p53 = scmp.eq.s32.totalorder %s22, 1
      %p54 = por %p52, %p53
      %p55 = scmp.ne.s32.totalorder %s44, %s45
      %p56 = scmp.eq.s32.totalorder %s22, 0
      %p57 = por %p55, %p56
      %p58 = scmp.ne.s32.totalorder %s44, %s45
      %p59 = scmp.eq.s32.totalorder %s23, 1
      %p60 = por %p58, %p59
      %p62 = scmp.ne.s32.totalorder %s45, %s61
      %p63 = scmp.eq.s32.totalorder %s23, 0
      %p64 = por %p62, %p63
      %s66 = sadd.s32 %s65, 1
      %p69 = scmp.eq.s32.totalorder %s17, 1
      %p70 = scmp.ne.s32.totalorder %s65, %s67
      %p71 = scmp.eq.s32.totalorder %s17, 0
      %p72 = por %p70, %p71
      %p73 = scmp.ne.s32.totalorder %s65, %s67
      %p74 = scmp.eq.s32.totalorder %s22, 1
      %p75 = por %p73, %p74
      %p76 = scmp.ne.s32.totalorder %s67, %s68
      %p77 = scmp.eq.s32.totalorder %s22, 0
      %p78 = por %p76, %p77
      %p79 = scmp.ne.s32.totalorder %s67, %s68
      %p80 = scmp.eq.s32.totalorder %s23, 1
      %p81 = por %p79, %p80
      %p83 = scmp.ne.s32.totalorder %s68, %s82
      %p84 = scmp.eq.s32.totalorder %s23, 0
      %p85 = por %p83, %p84
      %s86 = ssub.s32 %s24, %s36
      %p87 = scmp.eq.s32.totalorder %s86, 0
      %s89 = sadd.s32 %s88, 1
      %s90 = scalar_select %p87, %s88, %s89
      %p93 = pneg %p87
      %p94 = scmp.eq.s32.totalorder %s17, 1
      %p95 = por %p93, %p94
      %p96 = scmp.ne.s32.totalorder %s88, %s91
      %p97 = scmp.eq.s32.totalorder %s17, 0
      %p98 = por %p96, %p97
      %p99 = scmp.ne.s32.totalorder %s88, %s91
      %p100 = scmp.eq.s32.totalorder %s22, 1
      %p101 = por %p99, %p100
      %p102 = scmp.ne.s32.totalorder %s91, %s92
      %p103 = scmp.eq.s32.totalorder %s22, 0
      %p104 = por %p102, %p103
      %p105 = scmp.ne.s32.totalorder %s91, %s92
      %p106 = scmp.eq.s32.totalorder %s23, 1
      %p107 = por %p105, %p106
      %p109 = scmp.ne.s32.totalorder %s92, %s108
      %p110 = scmp.eq.s32.totalorder %s23, 0
      %p111 = por %p109, %p110
      %s113 = sadd.s32 %s112, 1
      %p116 = scmp.eq.s32.totalorder %s17, 1
      %p117 = scmp.ne.s32.totalorder %s112, %s114
      %p118 = scmp.eq.s32.totalorder %s17, 0
      %p119 = por %p117, %p118
      %p120 = scmp.ne.s32.totalorder %s112, %s114
      %p121 = scmp.eq.s32.totalorder %s22, 1
      %p122 = por %p120, %p121
      %p123 = scmp.ne.s32.totalorder %s114, %s115
      %p124 = scmp.eq.s32.totalorder %s22, 0
      %p125 = por %p123, %p124
      %p126 = scmp.ne.s32.totalorder %s114, %s115
      %p127 = scmp.eq.s32.totalorder %s23, 1
      %p128 = por %p126, %p127
      %p130 = scmp.ne.s32.totalorder %s115, %s129
      %p131 = scmp.eq.s32.totalorder %s23, 0
      %p132 = por %p130, %p131
      %s133 = ssub.s32 %s25, %s32
      %s134 = ssub.s32 %s24, %s36
      %s135 = sor.u32 %s133, %s134
      %p136 = scmp.eq.s32.totalorder %s135, 0
      %s138 = sadd.s32 %s137, 1
      %s139 = scalar_select %p136, %s137, %s138
      %p142 = pneg %p136
      %p143 = scmp.eq.s32.totalorder %s17, 1
      %p144 = por %p142, %p143
      %p145 = scmp.ne.s32.totalorder %s137, %s140
      %p146 = scmp.eq.s32.totalorder %s17, 0
      %p147 = por %p145, %p146
      %p148 = scmp.ne.s32.totalorder %s137, %s140
      %p149 = scmp.eq.s32.totalorder %s22, 1
      %p150 = por %p148, %p149
      %p151 = scmp.ne.s32.totalorder %s140, %s141
      %p152 = scmp.eq.s32.totalorder %s22, 0
      %p153 = por %p151, %p152
      %p154 = scmp.ne.s32.totalorder %s140, %s141
      %p155 = scmp.eq.s32.totalorder %s23, 1
      %p156 = por %p154, %p155
      %p158 = scmp.ne.s32.totalorder %s141, %s157
      %p159 = scmp.eq.s32.totalorder %s23, 0
      %p160 = por %p158, %p159
      %p161 = scmp.le.s32.totalorder 1, %s17
      %p162 = scmp.lt.s32.totalorder %s17, 3
      %p163 = pnand %p161, %p162
      %p164 = pneg %p163
      // Predicated region
      $region9: #{tpu_custom_call.1} parent=5 // pred_check
        _
      $region10: #{tpu_custom_call.1} parent=5 // pred_check_branch
        %166 = sbr.rel (%p163) target = $region12
      $region11: #{tpu_custom_call.1} parent=5 // pred_region
        %s167 = ssub.s32 %s17, 1
        // Predicated region
        $region13: #{tpu_custom_call.1} parent=11 // pred_check
          %p168 = pneg %p78
        $region14: #{tpu_custom_call.1} parent=11 // pred_check_branch
          %170 = sbr.rel (%p168) target = $region16
        $region15: #{tpu_custom_call.1} parent=11 // pred_region
          %s172 = ssub.s32 256, 256
          %173 = vsyncadd [#allocation6], %s172
          %s174 = sshll.u32 [#allocation5], 4
          %s175 = int_to_ptr.vmem [resolvable:$true] %s174
          %180 = dma.hbm_to_vmem [thread:$0]  %s1, 256, %s175, [#allocation6], 128, 128, 8
        $region16: #{tpu_custom_call.1} parent=11 // pred_fallthru
          _
        // Predicated region
        $region17: #{tpu_custom_call.1} parent=11 // pred_check
          %p181 = pneg %p104
        $region18: #{tpu_custom_call.1} parent=11 // pred_check_branch
          %183 = sbr.rel (%p181) target = $region20
        $region19: #{tpu_custom_call.1} parent=11 // pred_region
          %s185 = ssub.s32 128, 128
          %186 = vsyncadd [#allocation6], %s185
          %s187 = smul.addr %s26, 128
          %s188 = scalar_lea.hbm %s2, %s187
          %s190 = sshll.u32 [#allocation7], 4
          %s191 = int_to_ptr.vmem [resolvable:$true] %s190
          %193 = dma.hbm_to_vmem [thread:$0]  %s188, 128, %s191, [#allocation6]
        $region20: #{tpu_custom_call.1} parent=11 // pred_fallthru
          _
        // Predicated region
        $region21: #{tpu_custom_call.1} parent=11 // pred_check
          %p194 = pneg %p125
        $region22: #{tpu_custom_call.1} parent=11 // pred_check_branch
          %196 = sbr.rel (%p194) target = $region24
        $region23: #{tpu_custom_call.1} parent=11 // pred_region
          _
        $region24: #{tpu_custom_call.1} parent=11 // pred_fallthru
          _
      $region12: #{tpu_custom_call.1} parent=5 // pred_fallthru
        _
      %p197 = scmp.lt.s32.totalorder %s17, 2
      // Predicated region
      $region25: #{tpu_custom_call.1} parent=5 // pred_check
        %p198 = pneg %p197
      $region26: #{tpu_custom_call.1} parent=5 // pred_check_branch
        %200 = sbr.rel (%p198) target = $region28
      $region27: #{tpu_custom_call.1} parent=5 // pred_region
        // Predicated region
        $region29: #{tpu_custom_call.1} parent=27 // pred_check
          %p201 = pneg %p51
        $region30: #{tpu_custom_call.1} parent=27 // pred_check_branch
          %203 = sbr.rel (%p201) target = $region32
        $region31: #{tpu_custom_call.1} parent=27 // pred_region
          %s204 = sand.u32 %s41, 1
          %s205 = scalar_lea.sflag [#allocation3], %s204
          %s206 = sand.u32 %s41, 1
          %s207 = smul.addr %s206, 8
          %s208 = scalar_lea.vmem [#allocation2], %s207
          %s210 = ssub.s32 128, 128
          %211 = vsyncadd %s205, %s210
          %s212 = sadd.s32 %s24, %s25
          %s213 = smul.addr %s212, 128
          %s214 = scalar_lea.hbm %s0, %s213
          %s216 = sshll.u32 %s208, 4
          %s217 = int_to_ptr.vmem [resolvable:$true] %s216
          %219 = dma.hbm_to_vmem [thread:$0]  %s214, 128, %s217, %s205
        $region32: #{tpu_custom_call.1} parent=27 // pred_fallthru
          _
      $region28: #{tpu_custom_call.1} parent=5 // pred_fallthru
        _
      %p220 = scmp.le.s32.totalorder 1, %s17
      %p221 = scmp.lt.s32.totalorder %s17, 3
      %p222 = pnand %p220, %p221
      %p223 = pneg %p222
      // Predicated region
      $region33: #{tpu_custom_call.1} parent=5 // pred_check
        _
      $region34: #{tpu_custom_call.1} parent=5 // pred_check_branch
        %225 = sbr.rel (%p222) target = $region36
      $region35: #{tpu_custom_call.1} parent=5 // pred_region
        %s226 = ssub.s32 %s17, 1
        %s227 = sand.u32 %s44, 1
        %s228 = scalar_lea.sflag [#allocation3], %s227
        %s229 = sand.u32 %s44, 1
        %s230 = smul.addr %s229, 8
        %s231 = scalar_lea.vmem [#allocation2], %s230
        // Predicated region
        $region37: #{tpu_custom_call.1} parent=35 // pred_check
          %p232 = pneg %p57
        $region38: #{tpu_custom_call.1} parent=35 // pred_check_branch
          %234 = sbr.rel (%p232) target = $region40
        $region39: #{tpu_custom_call.1} parent=35 // pred_region
          %235 = dma.done %s228, 128
        $region40: #{tpu_custom_call.1} parent=35 // pred_fallthru
          _
        // Predicated region
        $region41: #{tpu_custom_call.1} parent=35 // pred_check
          %p236 = pneg %p78
        $region42: #{tpu_custom_call.1} parent=35 // pred_check_branch
          %238 = sbr.rel (%p236) target = $region44
        $region43: #{tpu_custom_call.1} parent=35 // pred_region
          %239 = dma.done [#allocation6], 256
        $region44: #{tpu_custom_call.1} parent=35 // pred_fallthru
          _
        // Predicated region
        $region45: #{tpu_custom_call.1} parent=35 // pred_check
          %p240 = pneg %p104
        $region46: #{tpu_custom_call.1} parent=35 // pred_check_branch
          %242 = sbr.rel (%p240) target = $region48
        $region47: #{tpu_custom_call.1} parent=35 // pred_region
          %243 = dma.done [#allocation6], 128
        $region48: #{tpu_custom_call.1} parent=35 // pred_fallthru
          _
        %s244 = sand.u32 %s44, 1
        %s245 = scalar_lea.sflag [#allocation3], %s244
        %s246 = sand.u32 %s44, 1
        %s247 = smul.addr %s246, 8
        %s248 = scalar_lea.vmem [#allocation2], %s247
        %p249 = pneg %p57
        %p250 = pneg %p54
        %p251 = pneg %p78
        %p252 = pneg %p75
        %p253 = pneg %p104
        %p254 = pneg %p101
        %p255 = pneg %p125
        %p256 = pneg %p122
        %p257 = pneg %p153
        %p258 = pneg %p150
        %s259 = sand.u32 %s140, 1
        %s260 = scalar_lea.sflag [#allocation4], %s259
        %s261 = sand.u32 %s140, 1
        %s262 = smul.addr %s261, 8
        %s263 = scalar_lea.vmem [#allocation8], %s262
        %v264 = vld [vmem:[%s231] sm:$0xff]
        %v265 = vld [vmem:[#allocation5] sm:$0xff]
        %v266 = vld [vmem:[#allocation5 + $0x8] sm:$0xff]
        %v267 = vld [vmem:[#allocation7] sm:$0xff]
        %vm268 = vcmask 130048
        %v270 = vsel %vm268, %v264, 0
        %272 = vmatprep.subr.mxu0 0.0
        %273 = vmatpush1.msra.mxu0 %v265
        %274 = vmatprep.subr.mxu0 0.0
        %275 = vmatpush1.msra.mxu0 %v266
        %276 = vmatprep.subr.mxu0 0.0
        %277 = vmatpush1.msra.mxu0 0.0
        %278 = vmatprep.subr.mxu0 0.0
        %279 = vmatpush1.msra.mxu0 0.0
        %280 = vmatprep.subr.mxu0 0.0
        %281 = vmatpush1.msra.mxu0 0.0
        %282 = vmatprep.subr.mxu0 0.0
        %283 = vmatpush1.msra.mxu0 0.0
        %284 = vmatprep.subr.mxu0 0.0
        %285 = vmatpush1.msra.mxu0 0.0
        %286 = vmatprep.subr.mxu0 0.0
        %287 = vmatpush1.msra.mxu0 0.0
        %288 = vmatprep.subr.mxu0 0.0
        %289 = vmatpush1.msra.mxu0 0.0
        %290 = vmatprep.subr.mxu0 0.0
        %291 = vmatpush1.msra.mxu0 0.0
        %292 = vmatprep.subr.mxu0 0.0
        %293 = vmatpush1.msra.mxu0 0.0
        %294 = vmatprep.subr.mxu0 0.0
        %295 = vmatpush1.msra.mxu0 0.0
        %296 = vmatprep.subr.mxu0 0.0
        %297 = vmatpush1.msra.mxu0 0.0
        %298 = vmatprep.subr.mxu0 0.0
        %299 = vmatpush1.msra.mxu0 0.0
        %300 = vmatprep.subr.mxu0 0.0
        %301 = vmatpush1.msra.mxu0 0.0
        %302 = vmatprep.subr.mxu0 0.0
        %303 = vmatpush1.msra.mxu0 0.0
        %304 = vmatprep.subr.mxu0 0.0
        %305 = vmatpush1.msra.mxu0 0.0
        %306 = vmatprep.subr.mxu0 0.0
        %307 = vmatpush1.msra.mxu0 0.0
        %308 = vmatprep.subr.mxu0 0.0
        %309 = vmatpush1.msra.mxu0 0.0
        %310 = vmatprep.subr.mxu0 0.0
        %311 = vmatpush1.msra.mxu0 0.0
        %312 = vmatprep.subr.mxu0 0.0
        %313 = vmatpush1.msra.mxu0 0.0
        %314 = vmatprep.subr.mxu0 0.0
        %315 = vmatpush1.msra.mxu0 0.0
        %316 = vmatprep.subr.mxu0 0.0
        %317 = vmatpush1.msra.mxu0 0.0
        %318 = vmatprep.subr.mxu0 0.0
        %319 = vmatpush1.msra.mxu0 0.0
        %320 = vmatprep.subr.mxu0 0.0
        %321 = vmatpush1.msra.mxu0 0.0
        %322 = vmatprep.subr.mxu0 0.0
        %323 = vmatpush1.msra.mxu0 0.0
        %324 = vmatprep.subr.mxu0 0.0
        %325 = vmatpush1.msra.mxu0 0.0
        %326 = vmatprep.subr.mxu0 0.0
        %327 = vmatpush1.msra.mxu0 0.0
        %328 = vmatprep.subr.mxu0 0.0
        %329 = vmatpush1.msra.mxu0 0.0
        %330 = vmatprep.subr.mxu0 0.0
        %331 = vmatpush1.msra.mxu0 0.0
        %332 = vmatprep.subr.mxu0 0.0
        %333 = vmatpush1.msra.mxu0 0.0
        %334 = vmatprep.subr.mxu0 0.0
        %335 = vmatpush1.msra.mxu0 0.0
        %336 = vmatprep.mubr.f32.mxu0 0.0
        %337 = vmatmul.mubr.f32.gmra.mrb[0].mxu0 %v270
        %v338 = vpop.f32.mrb[0].mxu0
        %v339 = vadd.f32 %v267, %v338
        %v340 = vpop.f32.mrb[0].mxu0
        %341 = vdwg.mxu0
        %vm342 = vcmask 261120
        %v343 = vsel %vm342, %v339, 0.0
        %344 = vadd.xlane.f32.xlu0 %v343
        %v345 = vpop.xlane.xlu0 %344
        %v346 = vrcp.pop 32.0
        %v347 = vmul.f32 %v345, %v346
        %v348 = vsub.f32 %v339, %v347
        %v349 = vmul.f32 %v348, %v348
        %v350 = vsel %vm342, %v349, 0.0
        %351 = vadd.xlane.f32.xlu0 %v350
        %v352 = vpop.xlane.xlu0 %351
        %v353 = vmul.f32 %v352, %v346
        %v354 = vadd.f32 %v353, 1e-05
        %v355 = vrsqrt.pop %v354
        %v356 = vmul.f32 %v348, %v355
        %v357 = vld [vmem:[%s3] sm:$0x1]
        %v358 = vlaneseq
        %v359 = vshrl.u32 %v358, 7
        %v360 = vsub.s32 0, %v359
        %v361 = vrot.slane %v357, %v360
        %v362 = vmul.f32 %v356, %v361
        %v363 = vld [vmem:[%s3 + $0x1] sm:$0x1]
        %v364 = vlaneseq
        %v365 = vshrl.u32 %v364, 7
        %v366 = vsub.s32 0, %v365
        %v367 = vrot.slane %v363, %v366
        %v368 = vadd.f32 %v362, %v367
        %369 = vst.msk [vmem:[%s263] sm:$0xff] %vm342, %v368
        %s370 = sand.u32 %s140, 1
        %s371 = scalar_lea.sflag [#allocation4], %s370
        %s372 = sand.u32 %s140, 1
        %s373 = smul.addr %s372, 8
        %s374 = scalar_lea.vmem [#allocation8], %s373
        // Predicated region
        $region49: #{tpu_custom_call.1} parent=35 // pred_check
          %p375 = pneg %p150
        $region50: #{tpu_custom_call.1} parent=35 // pred_check_branch
          %377 = sbr.rel (%p375) target = $region52
        $region51: #{tpu_custom_call.1} parent=35 // pred_region
          %s379 = ssub.s32 128, 128
          %380 = vsyncadd %s371, %s379
          %s381 = sadd.s32 %s26, %s27
          %s382 = smul.addr %s381, 128
          %s383 = scalar_lea.hbm %s4, %s382
          %s385 = sshll.u32 %s374, 4
          %s386 = int_to_ptr.vmem [resolvable:$true] %s385
          %388 = dma.vmem_to_hbm [thread:$0]  %s386, 128, %s383, %s371
        $region52: #{tpu_custom_call.1} parent=35 // pred_fallthru
          _
      $region36: #{tpu_custom_call.1} parent=5 // pred_fallthru
        _
      %p389 = scmp.le.s32.totalorder 2, %s17
      // Predicated region
      $region53: #{tpu_custom_call.1} parent=5 // pred_check
        %p390 = pneg %p389
      $region54: #{tpu_custom_call.1} parent=5 // pred_check_branch
        %392 = sbr.rel (%p390) target = $region56
      $region55: #{tpu_custom_call.1} parent=5 // pred_region
        %s393 = ssub.s32 %s17, 2
        // Predicated region
        $region57: #{tpu_custom_call.1} parent=55 // pred_check
          %p394 = pneg %p156
        $region58: #{tpu_custom_call.1} parent=55 // pred_check_branch
          %396 = sbr.rel (%p394) target = $region60
        $region59: #{tpu_custom_call.1} parent=55 // pred_region
          %s397 = sand.u32 %s141, 1
          %s398 = scalar_lea.sflag [#allocation4], %s397
          %s399 = sand.u32 %s141, 1
          %s400 = smul.addr %s399, 8
          %s401 = scalar_lea.vmem [#allocation8], %s400
          %402 = dma.done %s398, 128
        $region60: #{tpu_custom_call.1} parent=55 // pred_fallthru
          _
      $region56: #{tpu_custom_call.1} parent=5 // pred_fallthru
        _
    $region6: #{tpu_custom_call.1} parent=1 // loop_footer
      %s21 = sadd.s32 1, %s17
    $region7: #{tpu_custom_call.1} parent=1 // loop_footer_branch
      %16 = sbr.rel target = $region3
    $region8: #{tpu_custom_call.1} parent=1 // loop_exit
      _
    %403 = vsyncpa [#allocation3], 1
    %s404 = scalar_lea.sflag [#allocation3], 1
    %405 = vsyncpa %s404, 1
    %406 = vsyncpa [#allocation6], 1
    %407 = vsyncpa [#allocation4], 1
    %s408 = scalar_lea.sflag [#allocation4], 1
    %409 = vsyncpa %s408, 1

</llo_original>
